<compile_context>
chip_gen: v6e
topology: v6e:2x2x1
jax: 0.10.0
libtpu: 0.0.40
codegen_flags: <defaults>
</compile_context>

<pallas_src>
import jax
import jax.numpy as jnp
from jax.experimental import pallas as pl
from jax.experimental.pallas import tpu as pltpu

NREP = 6  # number of copies concatenated along dim 1


def _cat_mul_kernel(x1_ref, x2_ref, o_ref):
    # x1_ref: (M, bn) block of x1 in its native layout (lanes = bn)
    # x2_ref: (M, 1)  per-row scale (column vector)
    # o_ref : (bn, M*NREP)
    narrow_x1 = (jnp.dtype(x1_ref.dtype).itemsize
                 < jnp.dtype(o_ref.dtype).itemsize)
    if narrow_x1:
        # Mixed precision: transpose the narrow x1 first (half the XLU bytes),
        # then row-broadcast multiply in the transposed layout.
        v1 = x1_ref[...].T * x2_ref[...].T          # (bn, M) * (1, M)
    else:
        # Same-width dtypes: multiply in the lane-dense native layout (few VPU
        # ops), transpose the product once.
        v1 = (x1_ref[...] * x2_ref[...]).T          # ((M, bn) * (M, 1)).T
    v1 = v1.astype(o_ref.dtype)                     # (bn, M)
    # Build the full output tile in registers (lane concat rides the XLU
    # slack) and issue a SINGLE store -> minimal vector-store-slot pressure.
    o_ref[...] = jnp.concatenate([v1] * NREP, axis=1)


def _round_up(x, m):
    return ((x + m - 1) // m) * m


def _pick_block_n(N, M, out_w, in_itemsize, out_itemsize):
    """VMEM-budget-derived block over N (multiple of 128, >= 2 grid steps)."""
    # Per output-row VMEM footprint: double-buffered input + output blocks,
    # counting lane padding, plus headroom for in-kernel temporaries.
    pad_m = _round_up(max(M, 1), 8)
    pad_w = _round_up(max(out_w, 1), 128)
    per_row = 2 * pad_m * in_itemsize + 4 * pad_w * out_itemsize
    try:
        vmem = pltpu.get_tpu_info().vmem_capacity_bytes  # 64 MiB v7x, 128 MiB v5e/v6e
    except Exception:
        vmem = 64 << 20
    budget = min(vmem // 8, 8 << 20)   # stays under every generation's scoped default
    bn = max(128, (budget // per_row) // 128 * 128)
    # Guarantee >= 2 grid steps so v7x's second TensorCore (and megacore on
    # v5e/v6e) gets work instead of idling.
    bn = min(bn, _round_up(pl.cdiv(N, 2), 128))
    # Prefer an even number of steps (balanced split across two cores).
    steps = pl.cdiv(N, bn)
    if steps > 1 and steps % 2 == 1:
        alt = _round_up(pl.cdiv(N, steps + 1), 128)
        if alt >= 128 and pl.cdiv(N, alt) % 2 == 0:
            bn = alt
    return bn


def cat_mul(x1, x2):
    """out = concat([x1.T * x2] * 6, axis=1).  x1: (M, N), x2: (1, M)."""
    M, N = x1.shape
    assert x2.shape == (1, M), f"x2 must have shape (1, {M}), got {x2.shape}"
    out_w = M * NREP
    out_dtype = jnp.result_type(x1.dtype, x2.dtype)
    x2_col = x2.reshape(M, 1)                       # free metadata reshape (XLA)

    if N >= 256:
        block_n = _pick_block_n(N, M, out_w,
                                jnp.dtype(x1.dtype).itemsize,
                                jnp.dtype(out_dtype).itemsize)
    else:
        # Tiny case: single block equal to the full array dims (launch-bound).
        block_n = N
    steps = pl.cdiv(N, block_n)                     # last block auto-masked

    cost = pl.CostEstimate(
        flops=N * M,
        transcendentals=0,
        bytes_accessed=(N * M * jnp.dtype(x1.dtype).itemsize
                        + M * jnp.dtype(x2.dtype).itemsize
                        + N * out_w * jnp.dtype(out_dtype).itemsize),
    )

    return pl.pallas_call(
        _cat_mul_kernel,
        out_shape=jax.ShapeDtypeStruct((N, out_w), out_dtype),
        grid=(steps,),
        in_specs=[
            pl.BlockSpec((M, block_n), lambda i: (0, i)),
            pl.BlockSpec((M, 1), lambda i: (0, 0)),
        ],
        out_specs=pl.BlockSpec((block_n, out_w), lambda i: (i, 0)),
        compiler_params=pltpu.CompilerParams(
            dimension_semantics=("parallel",),
            vmem_limit_bytes=32 << 20,
        ),
        cost_estimate=cost,
    )(x1, x2_col)


def cat_mul_ref(x1, x2):
    v1 = x1.T * x2
    return jnp.concatenate([v1] * NREP, axis=1)


if __name__ == "__main__":
    key = jax.random.PRNGKey(0)
    k1, k2, k3, k4, k5, k6 = jax.random.split(key, 6)

    # Module-sized case: like torch.rand((2, 4)) with per-row scales for its 2 rows.
    x1 = jax.random.uniform(k1, (2, 4), dtype=jnp.float32)
    x2 = jax.random.uniform(k2, (1, 2), dtype=jnp.float32)
    out = jax.block_until_ready(cat_mul(x1, x2))
    ref = cat_mul_ref(x1, x2)
    assert out.shape == (4, 12), out.shape
    assert jnp.allclose(out, ref, atol=1e-6), "mismatch vs reference (small)"

    # Gridded path, divisible N (even 2-step parallel grid).
    xb1 = jax.random.uniform(k3, (8, 1024), dtype=jnp.float32)
    xb2 = jax.random.uniform(k4, (1, 8), dtype=jnp.float32)
    outb = jax.block_until_ready(cat_mul(xb1, xb2))
    refb = cat_mul_ref(xb1, xb2)
    assert outb.shape == (1024, 48), outb.shape
    assert jnp.allclose(outb, refb, atol=1e-6), "mismatch vs reference (gridded)"

    # Gridded path, N not a multiple of the block size (last block masked).
    xc1 = jax.random.uniform(k5, (8, 900), dtype=jnp.float32)
    xc2 = jax.random.uniform(k6, (1, 8), dtype=jnp.float32)
    outc = jax.block_until_ready(cat_mul(xc1, xc2))
    refc = cat_mul_ref(xc1, xc2)
    assert outc.shape == (900, 48), outc.shape
    assert jnp.allclose(outc, refc, atol=1e-6), "mismatch vs reference (ragged)"

    print("KERNEL_OK")
</pallas_src>

<mosaic_0001>
module attributes {stable_mosaic.version = 11 : i64} {
  func.func @_cat_mul_kernel(%arg0: i32, %arg1: memref<2x4xf32, #tpu.memory_space<vmem>>, %arg2: memref<2x1xf32, #tpu.memory_space<vmem>>, %arg3: memref<4x12xf32, #tpu.memory_space<vmem>>) attributes {dimension_semantics = [#tpu.dimension_semantics<parallel>], iteration_bounds = array<i64: 1>, scalar_prefetch = 0 : i64, scratch_operands = 0 : i64, tpu.core_type = #tpu.core_type<tc>, window_params = [{transform_indices = @transform_0, window_bounds = array<i64: 2, 4>}, {pipeline_mode = #tpu.pipeline_mode<synchronous>, transform_indices = @transform_1, window_bounds = array<i64: 2, 1>}, {transform_indices = @transform_2, window_bounds = array<i64: 4, 12>}]} {
    %c0 = arith.constant 0 : index
    %c0_0 = arith.constant 0 : index
    %0 = vector.load %arg1[%c0, %c0_0] : memref<2x4xf32, #tpu.memory_space<vmem>>, vector<2x4xf32>
    %c0_1 = arith.constant 0 : index
    %c0_2 = arith.constant 0 : index
    %1 = vector.load %arg2[%c0_1, %c0_2] : memref<2x1xf32, #tpu.memory_space<vmem>>, vector<2x1xf32>
    %2 = vector.broadcast %1 : vector<2x1xf32> to vector<2x4xf32>
    %3 = arith.mulf %0, %2 : vector<2x4xf32>
    %4 = tpu.transpose %3, [1, 0] : vector<2x4xf32> -> vector<4x2xf32>
    %5 = tpu.concatenate %4, %4, %4, %4, %4, %4 in 1 : vector<4x2xf32>, vector<4x2xf32>, vector<4x2xf32>, vector<4x2xf32>, vector<4x2xf32>, vector<4x2xf32> -> vector<4x12xf32>
    %c0_3 = arith.constant 0 : index
    %c0_4 = arith.constant 0 : index
    %6 = vector.load %arg3[%c0_3, %c0_4] : memref<4x12xf32, #tpu.memory_space<vmem>>, vector<4x12xf32>
    tpu.vector_store %arg3[%c0_3, %c0_4], %5 {strides = array<i32>} : memref<4x12xf32, #tpu.memory_space<vmem>>, vector<4x12xf32>,
    return
  }
  func.func @transform_0(%arg0: i32) -> (i32, i32) {
    %c0_i32 = arith.constant 0 : i32
    %c0_i32_0 = arith.constant 0 : i32
    return %c0_i32, %arg0 : i32, i32
  }
  func.func @transform_1(%arg0: i32) -> (i32, i32) {
    %c0_i32 = arith.constant 0 : i32
    %c0_i32_0 = arith.constant 0 : i32
    %c0_i32_1 = arith.constant 0 : i32
    return %c0_i32, %c0_i32_0 : i32, i32
  }
  func.func @transform_2(%arg0: i32) -> (i32, i32) {
    %c0_i32 = arith.constant 0 : i32
    %c0_i32_0 = arith.constant 0 : i32
    return %arg0, %c0_i32 : i32, i32
  }
}

</mosaic_0001>

<llo_original>
// kernel: tpu_custom_call.1
$region0: #{tpu_custom_call.1}
  #allocation0 [shape = 'u32[]', space=smem, size = 0x4, offset = 0x4, fixed_abs, tag = 'smem constant byte address 0x4 - core index']
  #allocation1 [shape = 'u32[144,128]{1,0:T(1,128)}', space=vmem, size = 0x12000, scoped, tag = 'internal scratch']
  %s0 = inlined_call_operand.vmem [shape: f32[2,4], index: 0, kind: input, shape index: {}]
  %s1 = inlined_call_operand.vmem [shape: f32[2,1], index: 1, kind: input, shape index: {}]
  %s2 = inlined_call_operand.hbm [shape: f32[4,12], index: 2, kind: output, shape index: {}]
  %s3 = sld [smem:[#allocation0]]
  $region18: #{tpu_custom_call.1} parent=0
    _
  %s5 = ssub.s32 1, %s3
  %s6 = scalar_select 0, %s5, %s3
  $region1: #{tpu_custom_call.1} parent=0
    #allocation2 [shape = 'u8[2048]{0}', space=vmem, size = 0x800, scoped, tag = 'output window, operand 0, single buffered']
    #allocation3 [shape = 's32[1]{0}', space=sflag, size = 0x4, scoped, tag = 'scoped memory for tpu_custom_call.1']
    %7 = vsyncpa [#allocation3], 0
    // Predicated region
    $region2: #{tpu_custom_call.1} parent=1 // pred_check
      _
    $region3: #{tpu_custom_call.1} parent=1 // pred_check_branch
      %9 = sbr.rel (0) target = $region5
    $region4: #{tpu_custom_call.1} parent=1 // pred_region
      _
    $region5: #{tpu_custom_call.1} parent=1 // pred_fallthru
      _
    // Predicated region
    $region6: #{tpu_custom_call.1} parent=1 // pred_check
      _
    $region7: #{tpu_custom_call.1} parent=1 // pred_check_branch
      %11 = sbr.rel (0) target = $region9
    $region8: #{tpu_custom_call.1} parent=1 // pred_region
      _
    $region9: #{tpu_custom_call.1} parent=1 // pred_fallthru
      _
    %v12 = vld [vmem:[%s0] sm:$0x3]
    %v13 = vld [vmem:[%s1] sm:$0x3]
    %15 = vset.pattern.permute.xlu0 0
    %16 = vperm.xlu0 %15, %v13
    %v17 = vpop.permute.xlu0 %16
    %v19 = vmul.f32 %v12, %v17
    %20 = vxpose.xlu0.b32.start [1/16] %v19, 128
    %21 = vxpose.xlu0.b32.cont [2/16] 0.0, 128
    %22 = vxpose.xlu0.b32.cont [3/16] 0.0, 128
    %23 = vxpose.xlu0.b32.cont [4/16] 0.0, 128
    %24 = vxpose.xlu0.b32.cont [5/16] 0.0, 128
    %25 = vxpose.xlu0.b32.cont [6/16] 0.0, 128
    %26 = vxpose.xlu0.b32.cont [7/16] 0.0, 128
    %27 = vxpose.xlu0.b32.cont [8/16] 0.0, 128
    %28 = vxpose.xlu0.b32.cont [9/16] 0.0, 128
    %29 = vxpose.xlu0.b32.cont [10/16] 0.0, 128
    %30 = vxpose.xlu0.b32.cont [11/16] 0.0, 128
    %31 = vxpose.xlu0.b32.cont [12/16] 0.0, 128
    %32 = vxpose.xlu0.b32.cont [13/16] 0.0, 128
    %33 = vxpose.xlu0.b32.cont [14/16] 0.0, 128
    %34 = vxpose.xlu0.b32.cont [15/16] 0.0, 128
    %35 = vxpose.xlu0.b32.end [16/16] 0.0, 128
    %v36 = vpop.trf.xlu0
    %v37 = vpop.trf.xlu0
    %v38 = vpop.trf.xlu0
    %v39 = vpop.trf.xlu0
    %v40 = vpop.trf.xlu0
    %v41 = vpop.trf.xlu0
    %v42 = vpop.trf.xlu0
    %v43 = vpop.trf.xlu0
    %v44 = vpop.trf.xlu0
    %v45 = vpop.trf.xlu0
    %v46 = vpop.trf.xlu0
    %v47 = vpop.trf.xlu0
    %v48 = vpop.trf.xlu0
    %v49 = vpop.trf.xlu0
    %v50 = vpop.trf.xlu0
    %v51 = vpop.trf.xlu0
    %53 = vrot.lane.b32.xlu0 %v36, 2
    %v54 = vpop.permute.xlu0 %53
    %56 = vrot.lane.b32.xlu0 %v36, 4
    %v57 = vpop.permute.xlu0 %56
    %59 = vrot.lane.b32.xlu0 %v36, 6
    %v60 = vpop.permute.xlu0 %59
    %62 = vrot.lane.b32.xlu0 %v36, 8
    %v63 = vpop.permute.xlu0 %62
    %65 = vrot.lane.b32.xlu0 %v36, 10
    %v66 = vpop.permute.xlu0 %65
    %vm68 = vcmask 15360
    %v69 = vsel %vm68, %v36, %v54
    %vm70 = vcmask 31744
    %v71 = vsel %vm70, %v69, %v57
    %vm72 = vcmask 48128
    %v73 = vsel %vm72, %v71, %v60
    %vm74 = vcmask 64512
    %v75 = vsel %vm74, %v73, %v63
    %vm76 = vcmask 80896
    %v77 = vsel %vm76, %v75, %v66
    %vm78 = vcmask 93184
    %79 = vst.msk [vmem:[#allocation2] sm:$0xf] %vm78, %v77
    // Predicated region
    $region10: #{tpu_custom_call.1} parent=1 // pred_check
      _
    $region11: #{tpu_custom_call.1} parent=1 // pred_check_branch
      %81 = sbr.rel (0) target = $region13
    $region12: #{tpu_custom_call.1} parent=1 // pred_region
      %s83 = ssub.s32 64, 64
      %84 = vsyncadd [#allocation3], %s83
      %s86 = sshll.u32 [#allocation2], 4
      %s87 = int_to_ptr.vmem [resolvable:$true] %s86
      %89 = dma.vmem_to_hbm [thread:$0]  %s87, 64, %s2, [#allocation3]
    $region13: #{tpu_custom_call.1} parent=1 // pred_fallthru
      _
    // Predicated region
    $region14: #{tpu_custom_call.1} parent=1 // pred_check
      _
    $region15: #{tpu_custom_call.1} parent=1 // pred_check_branch
      %91 = sbr.rel (0) target = $region17
    $region16: #{tpu_custom_call.1} parent=1 // pred_region
      %92 = dma.done [#allocation3], 64
    $region17: #{tpu_custom_call.1} parent=1 // pred_fallthru
      _
    %93 = vsyncpa [#allocation3], 1

</llo_original>
